<compile_context>
chip_gen: v6e
topology: v6e:2x2x1
jax: 0.10.0
libtpu: 0.0.40
codegen_flags: <defaults>
</compile_context>

<pallas_src>
import functools

import jax
import jax.numpy as jnp
from jax.experimental import pallas as pl
from jax.experimental.pallas import tpu as pltpu


def _round_up(a, b):
    return (a + b - 1) // b * b


def _vmem_limit_bytes():
    """Per-chip VMEM limit: 64 MiB on 128-MiB chips (v5e/v6e), 48 MiB otherwise (v7x)."""
    cap = None
    try:
        cap = int(getattr(pltpu.get_tpu_info(), "vmem_capacity_bytes", 0)) or None
    except Exception:
        cap = None
    if cap is not None and cap >= 128 * 1024 * 1024:
        return 64 * 1024 * 1024
    return 48 * 1024 * 1024


# ----------------------------------------------------------------------------------
# Kernels
# ----------------------------------------------------------------------------------
def _proj_kernel_resident(x_ref, w_ref, b_ref, o_ref):
    """Preferred path: full-width output tile, weight resident in VMEM.

    x_ref : (TM, C)      f32/bf16 input row tile (also the residual)
    w_ref : (C, C_out)   bf16 pre-transposed weight, resident (constant block index)
    b_ref : (1, C_out)   f32 bias
    o_ref : (TM, C_out)  output tile
    """
    x = x_ref[...]
    y = jnp.maximum(x, 0.0).astype(jnp.bfloat16)                         # ReLU + cast (VPU)
    acc = jnp.dot(y, w_ref[...], preferred_element_type=jnp.float32)     # MXU, f32 acc
    o_ref[...] = (x.astype(jnp.float32) + acc + b_ref[...]).astype(o_ref.dtype)


def _proj_kernel_tiled(x_ref, w_ref, b_ref, o_ref, y_ref, *, tn):
    """Large-C fallback: output-column tiles, streamed weight, hoisted relu scratch.

    x_ref : (TM, C)   input row tile, resident across the j (column) axis
    w_ref : (C, TN)   bf16 weight column tile (streamed over j)
    b_ref : (1, TN)   f32 bias slice
    o_ref : (TM, TN)  output tile
    y_ref : (TM, C)   bf16 scratch holding relu(x), filled once per row tile
    """
    j = pl.program_id(1)

    @pl.when(j == 0)                     # hoist ReLU + bf16 cast out of the j loop
    def _():
        y_ref[...] = jnp.maximum(x_ref[...], 0.0).astype(jnp.bfloat16)

    acc = jnp.dot(y_ref[...], w_ref[...], preferred_element_type=jnp.float32)
    col = pl.multiple_of(j * tn, 128)    # 128-aligned lane slice of the resident x tile
    res = x_ref[:, pl.ds(col, tn)].astype(jnp.float32)
    o_ref[...] = (res + acc + b_ref[...]).astype(o_ref.dtype)


# ----------------------------------------------------------------------------------
# Wrapper
# ----------------------------------------------------------------------------------
def decoder_proj(x, weight, bias, *, force_streamed_weight=False):
    """x: (B, T, C); weight: (C_out, C_in) PyTorch layout; bias: (C_out,)."""
    B, T, C = x.shape
    C_out, C_in = weight.shape
    assert C_in == C and C_out == C, "residual add requires in_channels == out_channels"

    N = B * T
    x2 = x.reshape(N, C)
    w_t = weight.T.astype(jnp.bfloat16)              # (C_in, C_out): native MXU layout, half HBM
    b2 = bias.reshape(1, C_out).astype(jnp.float32)

    vmem_limit = _vmem_limit_bytes()
    budget = vmem_limit - 8 * 1024 * 1024            # headroom for compiler-internal scratch
    xb = x.dtype.itemsize
    ob = x.dtype.itemsize
    N8 = _round_up(max(N, 1), 8)

    # ---------- preferred: resident weight, full-width output tile ----------------
    resident_tm = None
    if not force_streamed_weight:
        w_bytes = 2 * (C_in * C_out * 2)             # bf16 weight, double-buffered by Pallas
        for tm in (512, 256, 128, 64, 32, 16, 8):    # prefer big row tiles (fewer grid steps)
            cand = min(tm, N8)
            fp = 2 * cand * C_in * xb + 2 * cand * C_out * ob + w_bytes + 2 * C_out * 4
            if fp <= budget:
                resident_tm = cand
                break

    if resident_tm is not None or C_out % 128 != 0:
        # (A non-128-multiple C_out cannot be column-tiled; for this module such a C is
        #  always small enough to be resident anyway.)
        TM = resident_tm if resident_tm is not None else min(8, N8)
        out = pl.pallas_call(
            _proj_kernel_resident,
            out_shape=jax.ShapeDtypeStruct((N, C_out), x.dtype),
            grid_spec=pltpu.PrefetchScalarGridSpec(
                num_scalar_prefetch=0,
                grid=(pl.cdiv(N, TM),),
                in_specs=[
                    pl.BlockSpec((TM, C_in), lambda i: (i, 0)),      # x row tile (full K)
                    pl.BlockSpec((C_in, C_out), lambda i: (0, 0)),   # resident weight
                    pl.BlockSpec((1, C_out), lambda i: (0, 0)),      # bias
                ],
                out_specs=pl.BlockSpec((TM, C_out), lambda i: (i, 0)),
            ),
            compiler_params=pltpu.CompilerParams(
                dimension_semantics=("parallel",),                   # rows shard across TCs
                vmem_limit_bytes=vmem_limit),
        )(x2, w_t, b2)
        return out.reshape(B, T, C_out)

    # ---------- fallback: weight too large for VMEM residency ---------------------
    TN = 256 if C_out % 256 == 0 else 128
    TM = min(8, N8)
    for tm in (512, 256, 128, 64, 32, 16, 8):        # bigger TM => less weight re-streaming
        cand = min(tm, N8)
        fp = (2 * cand * C_in * xb                   # x row tile (double-buffered)
              + cand * C_in * 2                      # relu/bf16 scratch
              + 2 * C_in * TN * 2                    # streamed weight tile (double-buffered)
              + 2 * cand * TN * ob                   # output tile (double-buffered)
              + 2 * TN * 4)
        if fp <= budget:
            TM = cand
            break

    kernel = functools.partial(_proj_kernel_tiled, tn=TN)
    out = pl.pallas_call(
        kernel,
        out_shape=jax.ShapeDtypeStruct((N, C_out), x.dtype),
        grid_spec=pltpu.PrefetchScalarGridSpec(
            num_scalar_prefetch=0,
            grid=(pl.cdiv(N, TM), C_out // TN),
            in_specs=[
                pl.BlockSpec((TM, C_in), lambda i, j: (i, 0)),   # x row tile, resident over j
                pl.BlockSpec((C_in, TN), lambda i, j: (0, j)),   # weight column tile
                pl.BlockSpec((1, TN), lambda i, j: (0, j)),      # bias slice
            ],
            out_specs=pl.BlockSpec((TM, TN), lambda i, j: (i, j)),
            scratch_shapes=[pltpu.VMEM((TM, C_in), jnp.bfloat16)],   # hoisted relu(x)
        ),
        compiler_params=pltpu.CompilerParams(
            # j carries a dependence through the relu scratch -> must stay "arbitrary";
            # rows (i) are the truly parallel axis for megacore.
            dimension_semantics=("parallel", "arbitrary"),
            vmem_limit_bytes=vmem_limit),
    )(x2, w_t, b2)
    return out.reshape(B, T, C_out)


# ----------------------------------------------------------------------------------
# Reference / test helpers
# ----------------------------------------------------------------------------------
def make_weight_norm_params(key, channels):
    """Deterministic params mimicking nn.utils.parametrizations.weight_norm(Linear):
    weight = g * v / ||v|| (norm over the input dim, per output row)."""
    kv, kg, kb = jax.random.split(key, 3)
    v = jax.random.normal(kv, (channels, channels), jnp.float32) * 0.1
    g = jax.random.uniform(kg, (channels, 1), jnp.float32, 0.5, 1.5)
    bias = jax.random.normal(kb, (channels,), jnp.float32) * 0.05
    norm = jnp.sqrt(jnp.sum(v * v, axis=1, keepdims=True))
    weight = g * v / norm
    return weight, bias


def decoder_proj_ref(x, weight, bias, matmul_dtype=jnp.float32):
    y = jnp.maximum(x, 0.0).astype(matmul_dtype)
    w = weight.astype(matmul_dtype)
    y = jnp.einsum("btc,oc->bto", y, w, preferred_element_type=jnp.float32) + bias
    return x + y


if __name__ == "__main__":
    key = jax.random.PRNGKey(0)
    kx1, kp1, kx2, kp2 = jax.random.split(key, 4)

    # Case 1: small shapes, resident-weight (common) path.
    B, T, C = 2, 8, 32
    x = jax.random.normal(kx1, (B, T, C), jnp.float32)
    weight, bias = make_weight_norm_params(kp1, C)
    out = jax.block_until_ready(decoder_proj(x, weight, bias))
    assert out.shape == (B, T, C)
    ref_bf16 = decoder_proj_ref(x, weight, bias, matmul_dtype=jnp.bfloat16)
    assert jnp.allclose(out, ref_bf16, atol=1e-4, rtol=1e-4), "mismatch vs bf16 reference"
    ref_f32 = decoder_proj_ref(x, weight, bias)
    assert jnp.allclose(out, ref_f32, atol=5e-2, rtol=5e-2), "mismatch vs f32 reference"

    # Case 2: exercise the streamed-weight fallback (hoisted relu scratch, in-kernel
    # residual column slice, partial edge row block) on a 128-multiple channel count.
    B2, T2, C2 = 2, 10, 384
    x_b = jax.random.normal(kx2, (B2, T2, C2), jnp.float32)
    weight2, bias2 = make_weight_norm_params(kp2, C2)
    out2 = jax.block_until_ready(
        decoder_proj(x_b, weight2, bias2, force_streamed_weight=True))
    assert out2.shape == (B2, T2, C2)
    ref2_bf16 = decoder_proj_ref(x_b, weight2, bias2, matmul_dtype=jnp.bfloat16)
    assert jnp.allclose(out2, ref2_bf16, atol=2e-4, rtol=2e-4), "mismatch vs bf16 reference (tiled)"
    ref2_f32 = decoder_proj_ref(x_b, weight2, bias2)
    assert jnp.allclose(out2, ref2_f32, atol=5e-2, rtol=5e-2), "mismatch vs f32 reference (tiled)"

    print("KERNEL_OK")
</pallas_src>

<mosaic_0001>
module attributes {stable_mosaic.version = 11 : i64} {
  func.func @_proj_kernel_resident(%arg0: i32, %arg1: memref<16x32xf32, #tpu.memory_space<vmem>>, %arg2: memref<32x32xbf16, #tpu.memory_space<vmem>>, %arg3: memref<1x32xf32, #tpu.memory_space<vmem>>, %arg4: memref<16x32xf32, #tpu.memory_space<vmem>>) attributes {dimension_semantics = [#tpu.dimension_semantics<parallel>], iteration_bounds = array<i64: 1>, scalar_prefetch = 0 : i64, scratch_operands = 0 : i64, tpu.core_type = #tpu.core_type<tc>, window_params = [{transform_indices = @transform_0, window_bounds = array<i64: 16, 32>}, {pipeline_mode = #tpu.pipeline_mode<synchronous>, transform_indices = @transform_1, window_bounds = array<i64: 32, 32>}, {pipeline_mode = #tpu.pipeline_mode<synchronous>, transform_indices = @transform_2, window_bounds = array<i64: 1, 32>}, {transform_indices = @transform_3, window_bounds = array<i64: 16, 32>}]} {
    %c0 = arith.constant 0 : index
    %c0_0 = arith.constant 0 : index
    %0 = vector.load %arg1[%c0, %c0_0] : memref<16x32xf32, #tpu.memory_space<vmem>>, vector<16x32xf32>
    %cst = arith.constant 0.000000e+00 : f32
    %1 = vector.broadcast %cst : f32 to vector<16x32xf32>
    %2 = arith.maximumf %0, %1 : vector<16x32xf32>
    %3 = arith.truncf %2 : vector<16x32xf32> to vector<16x32xbf16>
    %c0_1 = arith.constant 0 : index
    %c0_2 = arith.constant 0 : index
    %4 = vector.load %arg2[%c0_1, %c0_2] : memref<32x32xbf16, #tpu.memory_space<vmem>>, vector<32x32xbf16>
    %cst_3 = arith.constant dense<0.000000e+00> : vector<16x32xf32>
    %5 = tpu.matmul %3, %4, %cst_3 {dimension_numbers = #tpu.dot_dimension_numbers<[1], [0], [0], [1], [0, 0, 1, 1], [], []>} : vector<16x32xbf16>, vector<32x32xbf16>, vector<16x32xf32> -> vector<16x32xf32>
    %6 = arith.addf %0, %5 : vector<16x32xf32>
    %c0_4 = arith.constant 0 : index
    %c0_5 = arith.constant 0 : index
    %7 = vector.load %arg3[%c0_4, %c0_5] : memref<1x32xf32, #tpu.memory_space<vmem>>, vector<1x32xf32>
    %8 = vector.broadcast %7 : vector<1x32xf32> to vector<16x32xf32>
    %9 = arith.addf %6, %8 : vector<16x32xf32>
    %c0_6 = arith.constant 0 : index
    %c0_7 = arith.constant 0 : index
    %10 = vector.load %arg4[%c0_6, %c0_7] : memref<16x32xf32, #tpu.memory_space<vmem>>, vector<16x32xf32>
    tpu.vector_store %arg4[%c0_6, %c0_7], %9 {strides = array<i32>} : memref<16x32xf32, #tpu.memory_space<vmem>>, vector<16x32xf32>,
    return
  }
  func.func @transform_0(%arg0: i32) -> (i32, i32) {
    %c0_i32 = arith.constant 0 : i32
    %c0_i32_0 = arith.constant 0 : i32
    return %arg0, %c0_i32 : i32, i32
  }
  func.func @transform_1(%arg0: i32) -> (i32, i32) {
    %c0_i32 = arith.constant 0 : i32
    %c0_i32_0 = arith.constant 0 : i32
    %c0_i32_1 = arith.constant 0 : i32
    return %c0_i32, %c0_i32_0 : i32, i32
  }
  func.func @transform_2(%arg0: i32) -> (i32, i32) {
    %c0_i32 = arith.constant 0 : i32
    %c0_i32_0 = arith.constant 0 : i32
    %c0_i32_1 = arith.constant 0 : i32
    return %c0_i32, %c0_i32_0 : i32, i32
  }
  func.func @transform_3(%arg0: i32) -> (i32, i32) {
    %c0_i32 = arith.constant 0 : i32
    %c0_i32_0 = arith.constant 0 : i32
    return %arg0, %c0_i32 : i32, i32
  }
}

</mosaic_0001>

<llo_original>
// kernel: tpu_custom_call.1
$region0: #{tpu_custom_call.1}
  #allocation0 [shape = 'u32[]', space=smem, size = 0x4, offset = 0x4, fixed_abs, tag = 'smem constant byte address 0x4 - core index']
  #allocation1 [shape = 'u32[144,128]{1,0:T(1,128)}', space=vmem, size = 0x12000, scoped, tag = 'internal scratch']
  %s0 = inlined_call_operand.hbm [shape: f32[16,32], index: 0, kind: input, shape index: {}]
  %s1 = inlined_call_operand.hbm [shape: bf16[32,32], index: 1, kind: input, shape index: {}]
  %s2 = inlined_call_operand.vmem [shape: f32[1,32], index: 2, kind: input, shape index: {}]
  %s3 = inlined_call_operand.hbm [shape: f32[16,32], index: 3, kind: output, shape index: {}]
  %s4 = sld [smem:[#allocation0]]
  $region30: #{tpu_custom_call.1} parent=0
    _
  %s6 = ssub.s32 1, %s4
  %s7 = scalar_select 0, %s6, %s4
  $region1: #{tpu_custom_call.1} parent=0
    #allocation2 [shape = 'u8[8192]{0}', space=vmem, size = 0x2000, scoped, tag = 'input window, operand 0, single buffered']
    #allocation3 [shape = 's32[1]{0}', space=sflag, size = 0x4, scoped, tag = 'scoped memory for tpu_custom_call.1']
    #allocation4 [shape = 's32[1]{0}', space=sflag, size = 0x4, scoped, tag = 'scoped memory for tpu_custom_call.1']
    #allocation5 [shape = 'u8[8192]{0}', space=vmem, size = 0x2000, scoped, tag = 'input window, operand 1, single buffered']
    #allocation6 [shape = 's32[1]{0}', space=sflag, size = 0x4, scoped, tag = 'scoped memory for tpu_custom_call.1']
    #allocation7 [shape = 'u8[8192]{0}', space=vmem, size = 0x2000, scoped, tag = 'output window, operand 0, single buffered']
    %8 = vsyncpa [#allocation3], 0
    %9 = vsyncpa [#allocation6], 0
    %10 = vsyncpa [#allocation4], 0
    // Predicated region
    $region2: #{tpu_custom_call.1} parent=1 // pred_check
      _
    $region3: #{tpu_custom_call.1} parent=1 // pred_check_branch
      %12 = sbr.rel (0) target = $region5
    $region4: #{tpu_custom_call.1} parent=1 // pred_region
      %s14 = ssub.s32 256, 256
      %15 = vsyncadd [#allocation3], %s14
      %s16 = sshll.u32 [#allocation2], 4
      %s17 = int_to_ptr.vmem [resolvable:$true] %s16
      %22 = dma.hbm_to_vmem [thread:$0]  %s0, 256, %s17, [#allocation3], 128, 128, 8
    $region5: #{tpu_custom_call.1} parent=1 // pred_fallthru
      _
    // Predicated region
    $region6: #{tpu_custom_call.1} parent=1 // pred_check
      _
    $region7: #{tpu_custom_call.1} parent=1 // pred_check_branch
      %24 = sbr.rel (0) target = $region9
    $region8: #{tpu_custom_call.1} parent=1 // pred_region
      %s26 = ssub.s32 256, 256
      %27 = vsyncadd [#allocation6], %s26
      %s28 = sshll.u32 [#allocation5], 4
      %s29 = int_to_ptr.vmem [resolvable:$true] %s28
      %34 = dma.hbm_to_vmem [thread:$0]  %s1, 256, %s29, [#allocation6], 64, 64, 4
    $region9: #{tpu_custom_call.1} parent=1 // pred_fallthru
      _
    // Predicated region
    $region10: #{tpu_custom_call.1} parent=1 // pred_check
      _
    $region11: #{tpu_custom_call.1} parent=1 // pred_check_branch
      %36 = sbr.rel (0) target = $region13
    $region12: #{tpu_custom_call.1} parent=1 // pred_region
      _
    $region13: #{tpu_custom_call.1} parent=1 // pred_fallthru
      _
    // Predicated region
    $region14: #{tpu_custom_call.1} parent=1 // pred_check
      _
    $region15: #{tpu_custom_call.1} parent=1 // pred_check_branch
      %38 = sbr.rel (0) target = $region17
    $region16: #{tpu_custom_call.1} parent=1 // pred_region
      %39 = dma.done [#allocation3], 256
    $region17: #{tpu_custom_call.1} parent=1 // pred_fallthru
      _
    // Predicated region
    $region18: #{tpu_custom_call.1} parent=1 // pred_check
      _
    $region19: #{tpu_custom_call.1} parent=1 // pred_check_branch
      %41 = sbr.rel (0) target = $region21
    $region20: #{tpu_custom_call.1} parent=1 // pred_region
      %42 = dma.done [#allocation6], 256
    $region21: #{tpu_custom_call.1} parent=1 // pred_fallthru
      _
    %v44 = vld [vmem:[#allocation2] sm:$0xff]
    %v45 = vld [vmem:[#allocation2 + $0x8] sm:$0xff]
    %v46 = vmax.f32 %v44, 0.0
    %v47 = vmax.f32 %v45, 0.0
    %v48 = vpack.c.bf16 %v47, %v46
    %v49 = vld [vmem:[#allocation5] sm:$0xf]
    %v50 = vld [vmem:[#allocation5 + $0x4] sm:$0xf]
    %v51 = vld [vmem:[#allocation5 + $0x8] sm:$0xf]
    %v52 = vld [vmem:[#allocation5 + $0xc] sm:$0xf]
    %v57 = vunpack.c.l.b16 %v49
    %v58 = vunpack.c.l.b16 %v50
    %v59 = vunpack.c.l.b16 %v51
    %v60 = vunpack.c.l.b16 %v52
    %v61 = vpack.c.b16 %v58, %v57
    %v62 = vpack.c.b16 %v60, %v59
    %vm65 = vcmask 261120
    %v67 = vsel %vm65, %v48, 0
    %69 = vmatprep.subr.bf16.mxu0 0
    %70 = vmatpush1.bf16.msra.mxu0 0
    %71 = vmatprep.subr.bf16.mxu0 0
    %72 = vmatpush1.bf16.msra.mxu0 0
    %73 = vmatprep.subr.bf16.mxu0 0
    %74 = vmatpush1.bf16.msra.mxu0 0
    %75 = vmatprep.subr.bf16.mxu0 0
    %76 = vmatpush1.bf16.msra.mxu0 0
    %77 = vmatprep.subr.bf16.mxu0 0
    %78 = vmatpush1.bf16.msra.mxu0 0
    %79 = vmatprep.subr.bf16.mxu0 0
    %80 = vmatpush1.bf16.msra.mxu0 0
    %81 = vmatprep.subr.bf16.mxu0 0
    %82 = vmatpush1.bf16.msra.mxu0 %v62
    %83 = vmatprep.subr.bf16.mxu0 0
    %84 = vmatpush1.bf16.msra.mxu0 %v61
    %85 = vmatprep.subr.bf16.mxu0 0
    %86 = vmatpush2.bf16.msra.mxu0 0
    %87 = vmatprep.subr.bf16.mxu0 0
    %88 = vmatpush2.bf16.msra.mxu0 0
    %89 = vmatprep.subr.bf16.mxu0 0
    %90 = vmatpush2.bf16.msra.mxu0 0
    %91 = vmatprep.subr.bf16.mxu0 0
    %92 = vmatpush2.bf16.msra.mxu0 0
    %93 = vmatprep.subr.bf16.mxu0 0
    %94 = vmatpush2.bf16.msra.mxu0 0
    %95 = vmatprep.subr.bf16.mxu0 0
    %96 = vmatpush2.bf16.msra.mxu0 0
    %97 = vmatprep.subr.bf16.mxu0 0
    %98 = vmatpush2.bf16.msra.mxu0 0
    %99 = vmatprep.subr.bf16.mxu0 0
    %100 = vmatpush2.bf16.msra.mxu0 0
    %101 = vmatprep.mubr.bf16.mxu0 0
    %102 = vmatmul.mubr.bf16.gmra.mxu0 %v67
    %v103 = vpop.f32.mrf.mxu0
    %v104 = vadd.f32 0.0, %v103
    %v105 = vpop.f32.mrf.mxu0
    %v106 = vpop.f32.mrf.mxu0
    %v107 = vadd.f32 0.0, %v106
    %v108 = vpop.f32.mrf.mxu0
    %109 = vdwg.mxu0
    %v110 = vadd.f32 %v44, %v104
    %v111 = vadd.f32 %v45, %v107
    %v112 = vld [vmem:[%s2] sm:$0x1]
    %v114 = vlaneseq
    %v115 = vshrl.u32 %v114, 7
    %v116 = vsub.s32 0, %v115
    %v117 = vrot.slane %v112, %v116
    %v119 = vadd.f32 %v110, %v117
    %v120 = vadd.f32 %v111, %v117
    %121 = vst.msk [vmem:[#allocation7] sm:$0xff] %vm65, %v119
    %122 = vst.msk [vmem:[#allocation7 + $0x8] sm:$0xff] %vm65, %v120
    // Predicated region
    $region22: #{tpu_custom_call.1} parent=1 // pred_check
      _
    $region23: #{tpu_custom_call.1} parent=1 // pred_check_branch
      %124 = sbr.rel (0) target = $region25
    $region24: #{tpu_custom_call.1} parent=1 // pred_region
      %s126 = ssub.s32 256, 256
      %127 = vsyncadd [#allocation4], %s126
      %s128 = sshll.u32 [#allocation7], 4
      %s129 = int_to_ptr.vmem [resolvable:$true] %s128
      %134 = dma.vmem_to_hbm [thread:$0]  %s129, 256, %s3, [#allocation4], 128, 128, 8
    $region25: #{tpu_custom_call.1} parent=1 // pred_fallthru
      _
    // Predicated region
    $region26: #{tpu_custom_call.1} parent=1 // pred_check
      _
    $region27: #{tpu_custom_call.1} parent=1 // pred_check_branch
      %136 = sbr.rel (0) target = $region29
    $region28: #{tpu_custom_call.1} parent=1 // pred_region
      %137 = dma.done [#allocation4], 256
    $region29: #{tpu_custom_call.1} parent=1 // pred_fallthru
      _
    %138 = vsyncpa [#allocation3], 1
    %139 = vsyncpa [#allocation6], 1
    %140 = vsyncpa [#allocation4], 1

</llo_original>
